<compile_context>
chip_gen: v7x
topology: tpu7x:2x2x1
jax: 0.10.0
libtpu: 0.0.40
codegen_flags: <defaults>
</compile_context>

<pallas_src>
import functools

import jax
import jax.numpy as jnp
from jax.experimental import pallas as pl
from jax.experimental.pallas import tpu as pltpu


def dot_attention_kernel(x_ref, w_ref, len_ref, out_ref):
    # x_ref:   (TB, L, H) input dtype (f32 or bf16)
    # w_ref:   (1, H)     f32  (nn.Linear weight row; ones in this module)
    # len_ref: (TB, 1)    int32
    # out_ref: (TB, L)    f32
    tb, seq_len, hidden = x_ref.shape

    # logits[b, l] = sum_h x[b, l, h] * w[h]
    # Multiply in the input dtype (bf16 VALU on v6e/v7x), accumulate the H
    # reduction in f32 — no full-tile f32 copy is materialized.
    x = x_ref[...]
    w = w_ref[...].reshape(1, 1, hidden).astype(x.dtype)
    logits = jnp.sum(x * w, axis=-1, dtype=jnp.float32)        # (TB, L)

    # numerically stable softmax numerator (max over full L, as in the ref)
    m = jnp.max(logits, axis=-1, keepdims=True)
    e = jnp.exp(logits - m)

    # length mask: position index < lengths[b]
    idx = jax.lax.broadcasted_iota(jnp.int32, (tb, seq_len), 1)
    e_masked = jnp.where(idx < len_ref[...], e, 0.0)           # (TB,1) broadcasts

    # fused normalization: the softmax denominator cancels against the
    # renormalization, so one masked sum + exact divide suffices.
    denom = jnp.sum(e_masked, axis=-1, keepdims=True)
    out_ref[...] = e_masked / denom


def _vmem_capacity_bytes():
    try:
        info = pltpu.get_tpu_info()
        return int(getattr(info, "vmem_capacity_bytes", 64 << 20))
    except Exception:
        return 64 << 20  # conservative default (v7x per-TC VMEM)


def _choose_batch_tile(batch, seq_len, hidden, in_itemsize, vmem_cap):
    """Pick TB from a generation-aware per-input-buffer VMEM budget."""
    if vmem_cap >= (128 << 20):          # v5e / v6e: 128 MiB physical
        per_buf_budget = 20 << 20
    else:                                # v7x: 64 MiB per TensorCore
        per_buf_budget = 14 << 20

    bytes_per_row = seq_len * hidden * in_itemsize
    tb = max(1, per_buf_budget // max(bytes_per_row, 1))

    # Keep >= 4 grid steps for large batches so the "parallel" batch axis can
    # be sharded across both v7x TensorCores and the pipeline stays busy.
    if batch >= 32:
        tb = min(tb, pl.cdiv(batch, 4))

    if tb >= batch:
        return batch
    # Partial tiles: keep the sublane dim of the (TB,1)/(TB,L) blocks 8-aligned.
    tb = max(8, (tb // 8) * 8)
    return min(tb, batch)


def _vmem_limit_bytes(tb, seq_len, hidden, in_itemsize, vmem_cap):
    """Self-consistent VMEM limit derived from the actual chosen tile."""
    footprint = 2 * tb * seq_len * hidden * in_itemsize   # double-buffered input
    footprint += 2 * tb * seq_len * 4                     # double-buffered output
    footprint += 2 * tb * seq_len * 4                     # f32 intermediates
    footprint += 2 * hidden * 4 + 2 * tb * 4 + (2 << 20)  # weight/lengths + slack
    limit = max(footprint, 32 << 20)
    return int(min(limit, vmem_cap - (8 << 20)))          # leave compiler headroom


def dot_attention_layer(inputs, lengths, weight):
    """inputs: (B, L, H), lengths: (B,) int, weight: (1, H) -> (B, L) f32."""
    batch, seq_len, hidden = inputs.shape
    w = weight.reshape(1, hidden).astype(jnp.float32)       # keep H on lanes
    lengths2d = lengths.astype(jnp.int32).reshape(batch, 1)

    vmem_cap = _vmem_capacity_bytes()
    itemsize = inputs.dtype.itemsize
    tb = _choose_batch_tile(batch, seq_len, hidden, itemsize, vmem_cap)
    grid = (pl.cdiv(batch, tb),)

    return pl.pallas_call(
        dot_attention_kernel,
        out_shape=jax.ShapeDtypeStruct((batch, seq_len), jnp.float32),
        grid_spec=pltpu.PrefetchScalarGridSpec(
            num_scalar_prefetch=0,
            grid=grid,
            in_specs=[
                pl.BlockSpec((tb, seq_len, hidden), lambda b: (b, 0, 0)),
                pl.BlockSpec((1, hidden), lambda b: (0, 0)),
                pl.BlockSpec((tb, 1), lambda b: (b, 0)),
            ],
            out_specs=pl.BlockSpec((tb, seq_len), lambda b: (b, 0)),
        ),
        compiler_params=pltpu.CompilerParams(
            dimension_semantics=("parallel",),
            vmem_limit_bytes=_vmem_limit_bytes(
                tb, seq_len, hidden, itemsize, vmem_cap),
        ),
    )(inputs, w, lengths2d)


def dot_attention_ref(inputs, lengths, weight):
    """Pure-JAX reference mirroring the PyTorch forward."""
    batch, seq_len, hidden = inputs.shape
    x = inputs.astype(jnp.float32)
    logits = (x.reshape(-1, hidden) @ weight.astype(jnp.float32).T).reshape(
        batch, seq_len)
    alphas = jax.nn.softmax(logits, axis=1)
    mask = (jnp.arange(seq_len)[None, :] < lengths[:, None]).astype(jnp.float32)
    alphas = alphas * mask
    return alphas / jnp.sum(alphas, axis=1, keepdims=True)


if __name__ == "__main__":
    B, L, H = 2, 8, 32

    key = jax.random.PRNGKey(0)
    k_x, _ = jax.random.split(key)
    inputs = jax.random.normal(k_x, (B, L, H), dtype=jnp.float32)
    lengths = jnp.array([5, 8], dtype=jnp.int32)

    # Deterministic init, matching W.weight.data.copy_(torch.ones((1, H)))
    weight = jnp.ones((1, H), dtype=jnp.float32)

    run = jax.jit(functools.partial(dot_attention_layer))
    out = jax.block_until_ready(run(inputs, lengths, weight))

    ref = dot_attention_ref(inputs, lengths, weight)
    assert out.shape == (B, L)
    assert jnp.allclose(out, ref, atol=1e-4, rtol=1e-4), "mismatch vs reference"
    # rows sum to 1 over valid positions
    assert jnp.allclose(jnp.sum(out, axis=1), jnp.ones((B,)), atol=1e-5)

    print("KERNEL_OK")
</pallas_src>

<mosaic_0001>
module attributes {stable_mosaic.version = 11 : i64} {
  func.func @dot_attention_kernel(%arg0: i32, %arg1: memref<2x8x32xf32, #tpu.memory_space<vmem>>, %arg2: memref<1x32xf32, #tpu.memory_space<vmem>>, %arg3: memref<2x1xi32, #tpu.memory_space<vmem>>, %arg4: memref<2x8xf32, #tpu.memory_space<vmem>>) attributes {dimension_semantics = [#tpu.dimension_semantics<parallel>], iteration_bounds = array<i64: 1>, scalar_prefetch = 0 : i64, scratch_operands = 0 : i64, tpu.core_type = #tpu.core_type<tc>, window_params = [{transform_indices = @transform_0, window_bounds = array<i64: 2, 8, 32>}, {pipeline_mode = #tpu.pipeline_mode<synchronous>, transform_indices = @transform_1, window_bounds = array<i64: 1, 32>}, {transform_indices = @transform_2, window_bounds = array<i64: 2, 1>}, {transform_indices = @transform_3, window_bounds = array<i64: 2, 8>}]} {
    %c0 = arith.constant 0 : index
    %c0_0 = arith.constant 0 : index
    %c0_1 = arith.constant 0 : index
    %0 = vector.load %arg1[%c0, %c0_0, %c0_1] : memref<2x8x32xf32, #tpu.memory_space<vmem>>, vector<2x8x32xf32>
    %c0_2 = arith.constant 0 : index
    %c0_3 = arith.constant 0 : index
    %1 = vector.load %arg2[%c0_2, %c0_3] : memref<1x32xf32, #tpu.memory_space<vmem>>, vector<1x32xf32>
    %2 = vector.shape_cast %1 : vector<1x32xf32> to vector<1x1x32xf32>
    %3 = vector.broadcast %2 : vector<1x1x32xf32> to vector<2x8x32xf32>
    %4 = arith.mulf %0, %3 : vector<2x8x32xf32>
    %cst = arith.constant dense<0.000000e+00> : vector<2x8xf32>
    %5 = vector.multi_reduction <add>, %4, %cst [2] : vector<2x8x32xf32> to vector<2x8xf32>
    %cst_4 = arith.constant dense<0xFF800000> : vector<2xf32>
    %6 = vector.multi_reduction <maximumf>, %5, %cst_4 [1] : vector<2x8xf32> to vector<2xf32>
    %7 = vector.shape_cast %6 : vector<2xf32> to vector<2x1xf32>
    %8 = vector.broadcast %7 : vector<2x1xf32> to vector<2x8xf32>
    %9 = arith.subf %5, %8 : vector<2x8xf32>
    %10 = math.exp %9 : vector<2x8xf32>
    %11 = tpu.iota {dimensions = array<i32: 1>} : vector<2x8xi32>
    %c0_5 = arith.constant 0 : index
    %c0_6 = arith.constant 0 : index
    %12 = vector.load %arg3[%c0_5, %c0_6] : memref<2x1xi32, #tpu.memory_space<vmem>>, vector<2x1xi32>
    %13 = vector.broadcast %12 : vector<2x1xi32> to vector<2x8xi32>
    %14 = arith.cmpi slt, %11, %13 : vector<2x8xi32>
    %cst_7 = arith.constant 0.000000e+00 : f32
    %15 = vector.broadcast %cst_7 : f32 to vector<2x8xf32>
    %16 = arith.select %14, %10, %15 : vector<2x8xi1>, vector<2x8xf32>
    %cst_8 = arith.constant dense<0.000000e+00> : vector<2xf32>
    %17 = vector.multi_reduction <add>, %16, %cst_8 [1] : vector<2x8xf32> to vector<2xf32>
    %18 = vector.shape_cast %17 : vector<2xf32> to vector<2x1xf32>
    %19 = vector.broadcast %18 : vector<2x1xf32> to vector<2x8xf32>
    %20 = arith.divf %16, %19 : vector<2x8xf32>
    %c0_9 = arith.constant 0 : index
    %c0_10 = arith.constant 0 : index
    %21 = vector.load %arg4[%c0_9, %c0_10] : memref<2x8xf32, #tpu.memory_space<vmem>>, vector<2x8xf32>
    tpu.vector_store %arg4[%c0_9, %c0_10], %20 {strides = array<i32>} : memref<2x8xf32, #tpu.memory_space<vmem>>, vector<2x8xf32>,
    return
  }
  func.func @transform_0(%arg0: i32) -> (i32, i32, i32) {
    %c0_i32 = arith.constant 0 : i32
    %c0_i32_0 = arith.constant 0 : i32
    %c0_i32_1 = arith.constant 0 : i32
    return %arg0, %c0_i32, %c0_i32_0 : i32, i32, i32
  }
  func.func @transform_1(%arg0: i32) -> (i32, i32) {
    %c0_i32 = arith.constant 0 : i32
    %c0_i32_0 = arith.constant 0 : i32
    %c0_i32_1 = arith.constant 0 : i32
    return %c0_i32, %c0_i32_0 : i32, i32
  }
  func.func @transform_2(%arg0: i32) -> (i32, i32) {
    %c0_i32 = arith.constant 0 : i32
    %c0_i32_0 = arith.constant 0 : i32
    return %arg0, %c0_i32 : i32, i32
  }
  func.func @transform_3(%arg0: i32) -> (i32, i32) {
    %c0_i32 = arith.constant 0 : i32
    %c0_i32_0 = arith.constant 0 : i32
    return %arg0, %c0_i32 : i32, i32
  }
}

</mosaic_0001>

<llo_original>
// kernel: dot_attention_layer.1
$region0: #{dot_attention_layer.1}
  #allocation0 [shape = 'u32[]', space=smem, size = 0x4, offset = 0x4, fixed_abs, tag = 'smem constant byte address 0x4 - core index']
  #allocation1 [shape = 'u32[144,128]{1,0:T(1,128)}', space=vmem, size = 0x12000, scoped, tag = 'internal scratch']
  %s0 = inlined_call_operand.hbm [shape: f32[2,8,32], index: 0, kind: input, shape index: {}]
  %s1 = inlined_call_operand.vmem [shape: f32[1,32], index: 1, kind: input, shape index: {}]
  %s2 = inlined_call_operand.vmem [shape: s32[2,1], index: 2, kind: input, shape index: {}]
  %s3 = inlined_call_operand.hbm [shape: f32[2,8], index: 3, kind: output, shape index: {}]
  %s4 = sld [smem:[#allocation0]]
  $region26: #{dot_attention_layer.1} parent=0
    _
  %s6 = ssub.s32 1, %s4
  %s7 = scalar_select 0, %s6, %s4
  $region1: #{dot_attention_layer.1} parent=0
    #allocation2 [shape = 'u8[8192]{0}', space=vmem, size = 0x2000, scoped, tag = 'input window, operand 0, single buffered']
    #allocation3 [shape = 's32[1]{0}', space=sflag, size = 0x4, scoped, tag = 'scoped memory for dot_attention_layer.1']
    #allocation4 [shape = 's32[1]{0}', space=sflag, size = 0x4, scoped, tag = 'scoped memory for dot_attention_layer.1']
    #allocation5 [shape = 'u8[1024]{0}', space=vmem, size = 0x400, scoped, tag = 'output window, operand 0, single buffered']
    %8 = vsyncpa [#allocation3], 0
    %9 = vsyncpa [#allocation4], 0
    // Predicated region
    $region2: #{dot_attention_layer.1} parent=1 // pred_check
      _
    $region3: #{dot_attention_layer.1} parent=1 // pred_check_branch
      %11 = sbr.rel (0) target = $region5
    $region4: #{dot_attention_layer.1} parent=1 // pred_region
      %s13 = ssub.s32 256, 256
      %14 = vsyncadd [#allocation3], %s13
      %s15 = sshll.u32 [#allocation2], 4
      %s16 = int_to_ptr.vmem [resolvable:$true] %s15
      %21 = dma.hbm_to_vmem [thread:$0]  %s0, 256, %s16, [#allocation3], 128, 128, 8
    $region5: #{dot_attention_layer.1} parent=1 // pred_fallthru
      _
    // Predicated region
    $region6: #{dot_attention_layer.1} parent=1 // pred_check
      _
    $region7: #{dot_attention_layer.1} parent=1 // pred_check_branch
      %23 = sbr.rel (0) target = $region9
    $region8: #{dot_attention_layer.1} parent=1 // pred_region
      _
    $region9: #{dot_attention_layer.1} parent=1 // pred_fallthru
      _
    // Predicated region
    $region10: #{dot_attention_layer.1} parent=1 // pred_check
      _
    $region11: #{dot_attention_layer.1} parent=1 // pred_check_branch
      %25 = sbr.rel (0) target = $region13
    $region12: #{dot_attention_layer.1} parent=1 // pred_region
      _
    $region13: #{dot_attention_layer.1} parent=1 // pred_fallthru
      _
    // Predicated region
    $region14: #{dot_attention_layer.1} parent=1 // pred_check
      _
    $region15: #{dot_attention_layer.1} parent=1 // pred_check_branch
      %27 = sbr.rel (0) target = $region17
    $region16: #{dot_attention_layer.1} parent=1 // pred_region
      %28 = dma.done [#allocation3], 256
    $region17: #{dot_attention_layer.1} parent=1 // pred_fallthru
      _
    %v29 = vld [vmem:[#allocation2] sm:$0xff]
    %v30 = vld [vmem:[#allocation2 + $0x8] sm:$0xff]
    %v31 = vld [vmem:[%s1] sm:$0x1]
    %v33 = vlaneseq
    %v34 = vshrl.u32 %v33, 7
    %v35 = vsub.s32 0, %v34
    %v36 = vrot.slane %v31, %v35
    %v38 = vmul.f32 %v29, %v36
    %v39 = vmul.f32 %v30, %v36
    %vm40 = vcmask 261120
    %v41 = vsel %vm40, %v38, 0.0
    %42 = vadd.xlane.f32.xlu0 %v41
    %v43 = vpop.xlane.xlu0 %42
    %v44 = vsel %vm40, %v39, 0.0
    %45 = vadd.xlane.f32.xlu0 %v44
    %v46 = vpop.xlane.xlu0 %45
    %v49 = vlaneseq
    %v50 = vand.u32 %v49, 127
    %v51 = vlaneseq
    %v52 = vshrl.u32 %v51, 7
    %v53 = vsub.s32 %v50, %v52
    %v54 = vrot.slane %v43, %v53
    %v55 = vlaneseq
    %v56 = vshrl.u32 %v55, 7
    %v57 = vsub.s32 %v50, %v56
    %v58 = vrot.slane %v46, %v57
    %vm59 = vcmask 1041409
    %v60 = vsel %vm59, %v58, %v54
    %vm62 = vcmask 58368
    %v63 = vsel %vm62, %v60, -inf
    %64 = vmax.xlane.f32.xlu0 %v63
    %v65 = vpop.xlane.xlu0 %64
    %v67 = vlaneseq
    %v68 = vshrl.u32 %v67, 7
    %v69 = vsub.s32 0, %v68
    %v70 = vrot.slane %v65, %v69
    %v71 = vlaneseq
    %v72 = vshrl.u32 %v71, 7
    %v73 = vsub.s32 1, %v72
    %v74 = vrot.slane %v65, %v73
    %v77 = vsub.f32 %v43, %v70
    %v78 = vsub.f32 %v46, %v74
    %v79 = vmul.f32 %v77, 1.442695
    %v80 = vpow.pop %v79
    %v81 = vmul.f32 %v78, 1.442695
    %v82 = vpow.pop %v81
    %v83 = vld [vmem:[%s2] sm:$0x3]
    %84 = vset.pattern.permute.xlu0 0
    %85 = vperm.xlu0 %84, %v83
    %v86 = vpop.permute.xlu0 %85
    %vm87 = vcmp.lt.s32.totalorder %v50, %v86
    %90 = vset.pattern.permute.xlu0 0
    %91 = vperm.xlu0 %90, %v80
    %v92 = vpop.permute.xlu0 %91
    %93 = vset.pattern.permute.xlu0 0
    %94 = vperm.xlu0 %93, %v82
    %v95 = vpop.permute.xlu0 %94
    %v96 = vlaneseq
    %v97 = vshrl.u32 %v96, 7
    %v98 = vsub.s32 %v50, %v97
    %v99 = vrot.slane %v92, %v98
    %v100 = vlaneseq
    %v101 = vshrl.u32 %v100, 7
    %v102 = vsub.s32 %v50, %v101
    %v103 = vrot.slane %v95, %v102
    %v104 = vsel %vm59, %v103, %v99
    %v106 = vsel %vm87, %v104, 0.0
    %v107 = vsel %vm62, %v106, 0.0
    %108 = vadd.xlane.f32.xlu0 %v107
    %v109 = vpop.xlane.xlu0 %108
    %v110 = vrcp.pop %v109
    %v111 = vmul.f32 %v106, %v110
    %112 = vst.msk [vmem:[#allocation5] sm:$0x3] %vm62, %v111
    // Predicated region
    $region18: #{dot_attention_layer.1} parent=1 // pred_check
      _
    $region19: #{dot_attention_layer.1} parent=1 // pred_check_branch
      %114 = sbr.rel (0) target = $region21
    $region20: #{dot_attention_layer.1} parent=1 // pred_region
      %s116 = ssub.s32 32, 32
      %117 = vsyncadd [#allocation4], %s116
      %s119 = sshll.u32 [#allocation5], 4
      %s120 = int_to_ptr.vmem [resolvable:$true] %s119
      %122 = dma.vmem_to_hbm [thread:$0]  %s120, 32, %s3, [#allocation4]
    $region21: #{dot_attention_layer.1} parent=1 // pred_fallthru
      _
    // Predicated region
    $region22: #{dot_attention_layer.1} parent=1 // pred_check
      _
    $region23: #{dot_attention_layer.1} parent=1 // pred_check_branch
      %124 = sbr.rel (0) target = $region25
    $region24: #{dot_attention_layer.1} parent=1 // pred_region
      %125 = dma.done [#allocation4], 32
    $region25: #{dot_attention_layer.1} parent=1 // pred_fallthru
      _
    %126 = vsyncpa [#allocation3], 1
    %127 = vsyncpa [#allocation4], 1

</llo_original>
